<compile_context>
chip_gen: v7x
topology: tpu7x:2x2x1
jax: 0.10.0
libtpu: 0.0.40
codegen_flags: <defaults>
</compile_context>

<pallas_src>
import jax
import jax.numpy as jnp
from jax.experimental import pallas as pl
from jax.experimental.pallas import tpu as pltpu


def infer_kernel(z_ref, w_ref, scale_ref, b_ref, o_ref):
    """Generator linear + Infer.postprocess.

    w_ref holds int8 weights; scale_ref holds per-output-column f32 scales.
    Dequantization to bf16 runs on the VPU (free filler work in a
    weight-stream-bound kernel), the matmul runs on the MXU with f32
    accumulation, and only the clamp(0, 1) of postprocess remains (the
    denormalize was folded into the weights at load time).
    """
    w = (w_ref[...].astype(jnp.float32) * scale_ref[...]).astype(jnp.bfloat16)
    acc = jnp.dot(z_ref[...], w, preferred_element_type=jnp.float32)
    acc = acc + b_ref[...]
    o_ref[...] = jnp.clip(acc, 0.0, 1.0).astype(o_ref.dtype)


def prepare_generator_params(w, b):
    """One-time (weight-load-time) transform.

    clamp((z @ w + b) * 0.5 + 0.5) == clamp(z @ (0.5*w) + (0.5*b + 0.5))
    The folded weight is quantized to int8 with per-output-column scales
    (halves HBM weight traffic vs bf16; the kernel dequantizes on the VPU).
    Bias stays f32 since it is added after the f32 accumulation.
    """
    w_f = w.astype(jnp.float32) * 0.5
    b_f = b.astype(jnp.float32) * 0.5 + 0.5
    col_max = jnp.max(jnp.abs(w_f), axis=0, keepdims=True)          # (1, OUT)
    scale = jnp.maximum(col_max, 1e-8) / 127.0                      # (1, OUT) f32
    w_q = jnp.clip(jnp.round(w_f / scale), -127.0, 127.0).astype(jnp.int8)
    return w_q, scale, b_f


def _vmem_budget_bytes():
    """Per-generation VMEM budget (3/4 of physical; v7x=48MiB, v5e/v6e=96MiB)."""
    phys = 64 * 1024 * 1024  # conservative fallback = v7x physical
    get_info = getattr(pltpu, "get_tpu_info", None)
    if get_info is not None:
        try:
            cap = getattr(get_info(), "vmem_capacity_bytes", None)
            if cap:
                phys = int(cap)
        except Exception:
            pass
    return (phys * 3) // 4


def infer_forward(z, w_q, w_scale, b_folded, *, channels, height, width,
                  tile_m=256, tile_n=8192):
    """Runs the fused, tiled Pallas kernel and reshapes to NCHW (bf16 pixels)."""
    batch, latent_dim = z.shape
    out_features = channels * height * width
    assert w_q.shape == (latent_dim, out_features)
    assert w_scale.shape == (1, out_features)
    assert b_folded.shape == (1, out_features)

    tm = min(tile_m, batch)

    # Lane-dense N tile (multiple of 128), capped so double-buffered
    # (int8 W + bf16 out + f32 scale + f32 bias) tiles fit the VMEM budget
    # of the current TPU generation.
    vmem_budget = _vmem_budget_bytes()
    per_col_bytes = 2 * (latent_dim * 1 + tm * 2 + 4 + 4)   # double-buffered, per output col
    fixed_bytes = 2 * tm * latent_dim * 2 + (1 << 20)        # z double-buffer + slack
    tn_cap = max(128, ((vmem_budget - fixed_bytes) // per_col_bytes) // 128 * 128)
    tn = min(tile_n, out_features, tn_cap)
    if out_features >= 128:
        tn = max(128, (tn // 128) * 128)

    grid_n = pl.cdiv(out_features, tn)
    grid_m = pl.cdiv(batch, tm)

    z_bf16 = z.astype(jnp.bfloat16)

    # Single-pass weight stream (M innermost), bf16 output writeback.
    cost = pl.CostEstimate(
        flops=2 * batch * latent_dim * out_features,
        transcendentals=0,
        bytes_accessed=(latent_dim * out_features * 1        # int8 weights, one pass
                        + out_features * 4 * 2               # f32 scales + f32 bias
                        + grid_n * batch * latent_dim * 2    # bf16 latents per N tile
                        + batch * out_features * 2),         # bf16 output
    )

    flat = pl.pallas_call(
        infer_kernel,
        out_shape=jax.ShapeDtypeStruct((batch, out_features), jnp.bfloat16),
        # N (weight-stream) axis OUTER, M (batch) axis INNER: W/scale/bias block
        # indices are constant across the inner axis, so they are fetched once.
        grid=(grid_n, grid_m),
        in_specs=[
            pl.BlockSpec((tm, latent_dim), lambda j, i: (i, 0)),   # z
            pl.BlockSpec((latent_dim, tn), lambda j, i: (0, j)),   # W (int8)
            pl.BlockSpec((1, tn), lambda j, i: (0, j)),            # scales
            pl.BlockSpec((1, tn), lambda j, i: (0, j)),            # bias
        ],
        out_specs=pl.BlockSpec((tm, tn), lambda j, i: (i, j)),
        compiler_params=pltpu.CompilerParams(
            dimension_semantics=("parallel", "parallel"),
            vmem_limit_bytes=vmem_budget,
        ),
        cost_estimate=cost,
    )(z_bf16, w_q, w_scale, b_folded)

    # Glue reshape to NCHW image layout (kept out of the kernel so the stored
    # slab stays lane-dense).
    return flat.reshape(batch, channels, height, width)


if __name__ == "__main__":
    # Small shapes consistent with the forward: batch=2, channels=4, 16x16.
    B, Z, C, H, W = 2, 32, 4, 16, 16
    OUT = C * H * W

    key = jax.random.PRNGKey(0)
    k_z, k_w, k_b = jax.random.split(key, 3)

    z = jax.random.normal(k_z, (B, Z), dtype=jnp.float32)
    # Deterministic synthetic generator parameters.
    w = jax.random.normal(k_w, (Z, OUT), dtype=jnp.float32) * (1.0 / Z**0.5)
    b = jax.random.normal(k_b, (1, OUT), dtype=jnp.float32) * 0.1

    # Load-time fold of denormalize + int8 quantization (done once, not per call).
    w_q, w_scale, b_folded = prepare_generator_params(w, b)

    # tile_n=512 at these toy sizes so the N grid axis is actually exercised.
    images = infer_forward(z, w_q, w_scale, b_folded,
                           channels=C, height=H, width=W, tile_n=512)
    images = jax.block_until_ready(images)

    assert images.shape == (B, C, H, W)
    images_f32 = images.astype(jnp.float32)

    # Reference 1: same quantized/bf16 math the kernel performs (tight tolerance).
    w_deq = (w_q.astype(jnp.float32) * w_scale).astype(jnp.bfloat16)
    ref_same = jnp.clip(
        jnp.dot(z.astype(jnp.bfloat16), w_deq, preferred_element_type=jnp.float32)
        + b_folded, 0.0, 1.0).astype(jnp.bfloat16).astype(jnp.float32)
    ref_same = ref_same.reshape(B, C, H, W)
    assert jnp.allclose(images_f32, ref_same, atol=2e-3, rtol=2e-3)

    # Reference 2: exact PyTorch Infer math in f32 (loose tol for int8/bf16 path).
    ref_f32 = jnp.clip((z @ w + b) * 0.5 + 0.5, 0.0, 1.0).reshape(B, C, H, W)
    assert jnp.allclose(images_f32, ref_f32, atol=5e-2, rtol=5e-2)

    assert float(images_f32.min()) >= 0.0 and float(images_f32.max()) <= 1.0

    print("KERNEL_OK")
</pallas_src>

<mosaic_0001>
module attributes {stable_mosaic.version = 11 : i64} {
  func.func @infer_kernel(%arg0: i32, %arg1: i32, %arg2: memref<2x32xbf16, #tpu.memory_space<vmem>>, %arg3: memref<32x512xi8, #tpu.memory_space<vmem>>, %arg4: memref<1x512xf32, #tpu.memory_space<vmem>>, %arg5: memref<1x512xf32, #tpu.memory_space<vmem>>, %arg6: memref<2x512xbf16, #tpu.memory_space<vmem>>) attributes {dimension_semantics = [#tpu.dimension_semantics<parallel>, #tpu.dimension_semantics<parallel>], iteration_bounds = array<i64: 2, 1>, scalar_prefetch = 0 : i64, scratch_operands = 0 : i64, tpu.core_type = #tpu.core_type<tc>, window_params = [{transform_indices = @transform_0, window_bounds = array<i64: 2, 32>}, {transform_indices = @transform_1, window_bounds = array<i64: 32, 512>}, {transform_indices = @transform_2, window_bounds = array<i64: 1, 512>}, {transform_indices = @transform_3, window_bounds = array<i64: 1, 512>}, {transform_indices = @transform_4, window_bounds = array<i64: 2, 512>}]} {
    %c0 = arith.constant 0 : index
    %c0_0 = arith.constant 0 : index
    %0 = vector.load %arg3[%c0, %c0_0] : memref<32x512xi8, #tpu.memory_space<vmem>>, vector<32x512xi8>
    %1 = arith.sitofp %0 : vector<32x512xi8> to vector<32x512xf32>
    %c0_1 = arith.constant 0 : index
    %c0_2 = arith.constant 0 : index
    %2 = vector.load %arg4[%c0_1, %c0_2] : memref<1x512xf32, #tpu.memory_space<vmem>>, vector<1x512xf32>
    %3 = vector.broadcast %2 : vector<1x512xf32> to vector<32x512xf32>
    %4 = arith.mulf %1, %3 : vector<32x512xf32>
    %5 = arith.truncf %4 : vector<32x512xf32> to vector<32x512xbf16>
    %c0_3 = arith.constant 0 : index
    %c0_4 = arith.constant 0 : index
    %6 = vector.load %arg2[%c0_3, %c0_4] : memref<2x32xbf16, #tpu.memory_space<vmem>>, vector<2x32xbf16>
    %cst = arith.constant dense<0.000000e+00> : vector<2x512xf32>
    %7 = tpu.matmul %6, %5, %cst {dimension_numbers = #tpu.dot_dimension_numbers<[1], [0], [0], [1], [0, 0, 1, 1], [], []>} : vector<2x32xbf16>, vector<32x512xbf16>, vector<2x512xf32> -> vector<2x512xf32>
    %c0_5 = arith.constant 0 : index
    %c0_6 = arith.constant 0 : index
    %8 = vector.load %arg5[%c0_5, %c0_6] : memref<1x512xf32, #tpu.memory_space<vmem>>, vector<1x512xf32>
    %9 = vector.broadcast %8 : vector<1x512xf32> to vector<2x512xf32>
    %10 = arith.addf %7, %9 : vector<2x512xf32>
    %cst_7 = arith.constant 0.000000e+00 : f32
    %cst_8 = arith.constant 1.000000e+00 : f32
    %11 = vector.broadcast %cst_7 : f32 to vector<2x512xf32>
    %12 = arith.maximumf %11, %10 : vector<2x512xf32>
    %13 = vector.broadcast %cst_8 : f32 to vector<2x512xf32>
    %14 = arith.minimumf %13, %12 : vector<2x512xf32>
    %15 = arith.truncf %14 : vector<2x512xf32> to vector<2x512xbf16>
    %c0_9 = arith.constant 0 : index
    %c0_10 = arith.constant 0 : index
    %16 = vector.load %arg6[%c0_9, %c0_10] : memref<2x512xbf16, #tpu.memory_space<vmem>>, vector<2x512xbf16>
    tpu.vector_store %arg6[%c0_9, %c0_10], %15 {strides = array<i32>} : memref<2x512xbf16, #tpu.memory_space<vmem>>, vector<2x512xbf16>,
    return
  }
  func.func @transform_0(%arg0: i32, %arg1: i32) -> (i32, i32) {
    %c0_i32 = arith.constant 0 : i32
    %c0_i32_0 = arith.constant 0 : i32
    return %arg1, %c0_i32 : i32, i32
  }
  func.func @transform_1(%arg0: i32, %arg1: i32) -> (i32, i32) {
    %c0_i32 = arith.constant 0 : i32
    %c0_i32_0 = arith.constant 0 : i32
    return %c0_i32, %arg0 : i32, i32
  }
  func.func @transform_2(%arg0: i32, %arg1: i32) -> (i32, i32) {
    %c0_i32 = arith.constant 0 : i32
    %c0_i32_0 = arith.constant 0 : i32
    return %c0_i32, %arg0 : i32, i32
  }
  func.func @transform_3(%arg0: i32, %arg1: i32) -> (i32, i32) {
    %c0_i32 = arith.constant 0 : i32
    %c0_i32_0 = arith.constant 0 : i32
    return %c0_i32, %arg0 : i32, i32
  }
  func.func @transform_4(%arg0: i32, %arg1: i32) -> (i32, i32) {
    %c0_i32 = arith.constant 0 : i32
    return %arg1, %arg0 : i32, i32
  }
}

</mosaic_0001>

<llo_original>
// kernel: tpu_custom_call.1
$region0: #{tpu_custom_call.1}
  #allocation0 [shape = 'u32[]', space=smem, size = 0x4, offset = 0x4, fixed_abs, tag = 'smem constant byte address 0x4 - core index']
  #allocation1 [shape = 'u32[144,128]{1,0:T(1,128)}', space=vmem, size = 0x12000, scoped, tag = 'internal scratch']
  %s0 = inlined_call_operand.hbm [shape: bf16[2,32], index: 0, kind: input, shape index: {}]
  %s1 = inlined_call_operand.hbm [shape: s8[32,1024], index: 1, kind: input, shape index: {}]
  %s2 = inlined_call_operand.hbm [shape: f32[1,1024], index: 2, kind: input, shape index: {}]
  %s3 = inlined_call_operand.vmem [shape: f32[1,1024], index: 3, kind: input, shape index: {}]
  %s4 = inlined_call_operand.hbm [shape: bf16[2,1024], index: 4, kind: output, shape index: {}]
  %s5 = sld [smem:[#allocation0]]
  $region61: #{tpu_custom_call.1} parent=0
    _
  %s7 = ssub.s32 1, %s5
  %s8 = scalar_select 0, %s7, %s5
  $region1: #{tpu_custom_call.1} parent=0
    #allocation2 [shape = 'u8[512]{0}', space=vmem, size = 0x400, scoped, tag = 'input window, operand 0, single buffered']
    #allocation3 [shape = 's32[2]{0}', space=sflag, size = 0x8, scoped, tag = 'scoped memory for tpu_custom_call.1']
    #allocation4 [shape = 's32[2]{0}', space=sflag, size = 0x8, scoped, tag = 'scoped memory for tpu_custom_call.1']
    #allocation5 [shape = 'u8[32768]{0}', space=vmem, size = 0x8000, scoped, tag = 'input window, operand 1']
    #allocation6 [shape = 's32[2]{0}', space=sflag, size = 0x8, scoped, tag = 'scoped memory for tpu_custom_call.1']
    #allocation7 [shape = 'u8[4096]{0}', space=vmem, size = 0x1000, scoped, tag = 'input window, operand 2']
    #allocation8 [shape = 'u8[4096]{0}', space=vmem, size = 0x1000, scoped, tag = 'output window, operand 0']
    %9 = vsyncpa [#allocation3], 0
    %10 = vsyncpa [#allocation6], 0
    %s11 = scalar_lea.sflag [#allocation6], 1
    %12 = vsyncpa %s11, 0
    %13 = vsyncpa [#allocation4], 0
    %s14 = scalar_lea.sflag [#allocation4], 1
    %15 = vsyncpa %s14, 0
    loop: start=0, step=1, limit=4
    $region2: #{tpu_custom_call.1} parent=1 // loop_pre_header
      _
    $region3: #{tpu_custom_call.1} parent=1 // loop_header
      %s17 = sphi 0, %s21
      %p18 = scmp.ge.s32.totalorder %s17, 4
      %s24 = sphi 0, %s36
      %s25 = sphi 0, %s32
      %s26 = sphi 0, %s24
      %s27 = sphi 0, %s25
      %s28 = sphi 0, %s26
      %s29 = sphi 0, %s27
      %s39 = sphi 0, %s41
      %s42 = sphi 0, %s39
      %s43 = sphi 0, %s42
      %s59 = sphi 0, %s43
      %s65 = sphi 0, %s67
      %s68 = sphi 0, %s65
      %s69 = sphi 0, %s68
      %s85 = sphi 0, %s69
      %s91 = sphi 0, %s93
      %s94 = sphi 0, %s91
      %s95 = sphi 0, %s94
      %s111 = sphi 0, %s95
      %s117 = sphi 0, %s119
      %s120 = sphi 0, %s117
      %s121 = sphi 0, %s120
      %s137 = sphi 0, %s121
      %s145 = sphi 0, %s147
      %s148 = sphi 0, %s145
      %s149 = sphi 0, %s148
      %s165 = sphi 0, %s149
    $region4: #{tpu_custom_call.1} parent=1 // loop_header_branch
      %20 = sbr.rel (%p18) target = $region8
    $region5: #{tpu_custom_call.1} parent=1 // loop_body
      %s22 = ssub.s32 %s17, 1
      %s23 = ssub.s32 %s17, 2
      %s30 = sadd.s32 1, %s25
      %p31 = scmp.ge.s32.totalorder %s30, 1
      %s32 = scalar_select %p31, 0, %s30
      %s33 = sadd.s32 1, %s24
      %s34 = scalar_select %p31, %s33, %s24
      %p35 = scmp.ge.s32.totalorder %s34, 2
      %s36 = scalar_select %p35, 0, %s34
      %s37 = ssub.s32 %s25, %s32
      %p38 = scmp.eq.s32.totalorder %s37, 0
      %s40 = sadd.s32 %s39, 1
      %s41 = scalar_select %p38, %s39, %s40
      %p44 = pneg %p38
      %p45 = scmp.eq.s32.totalorder %s17, 1
      %p46 = por %p44, %p45
      %p47 = scmp.ne.s32.totalorder %s39, %s42
      %p48 = scmp.eq.s32.totalorder %s17, 0
      %p49 = por %p47, %p48
      %p50 = scmp.ne.s32.totalorder %s39, %s42
      %p51 = scmp.eq.s32.totalorder %s22, 1
      %p52 = por %p50, %p51
      %p53 = scmp.ne.s32.totalorder %s42, %s43
      %p54 = scmp.eq.s32.totalorder %s22, 0
      %p55 = por %p53, %p54
      %p56 = scmp.ne.s32.totalorder %s42, %s43
      %p57 = scmp.eq.s32.totalorder %s23, 1
      %p58 = por %p56, %p57
      %p60 = scmp.ne.s32.totalorder %s43, %s59
      %p61 = scmp.eq.s32.totalorder %s23, 0
      %p62 = por %p60, %p61
      %s63 = ssub.s32 %s24, %s36
      %p64 = scmp.eq.s32.totalorder %s63, 0
      %s66 = sadd.s32 %s65, 1
      %s67 = scalar_select %p64, %s65, %s66
      %p70 = pneg %p64
      %p71 = scmp.eq.s32.totalorder %s17, 1
      %p72 = por %p70, %p71
      %p73 = scmp.ne.s32.totalorder %s65, %s68
      %p74 = scmp.eq.s32.totalorder %s17, 0
      %p75 = por %p73, %p74
      %p76 = scmp.ne.s32.totalorder %s65, %s68
      %p77 = scmp.eq.s32.totalorder %s22, 1
      %p78 = por %p76, %p77
      %p79 = scmp.ne.s32.totalorder %s68, %s69
      %p80 = scmp.eq.s32.totalorder %s22, 0
      %p81 = por %p79, %p80
      %p82 = scmp.ne.s32.totalorder %s68, %s69
      %p83 = scmp.eq.s32.totalorder %s23, 1
      %p84 = por %p82, %p83
      %p86 = scmp.ne.s32.totalorder %s69, %s85
      %p87 = scmp.eq.s32.totalorder %s23, 0
      %p88 = por %p86, %p87
      %s89 = ssub.s32 %s24, %s36
      %p90 = scmp.eq.s32.totalorder %s89, 0
      %s92 = sadd.s32 %s91, 1
      %s93 = scalar_select %p90, %s91, %s92
      %p96 = pneg %p90
      %p97 = scmp.eq.s32.totalorder %s17, 1
      %p98 = por %p96, %p97
      %p99 = scmp.ne.s32.totalorder %s91, %s94
      %p100 = scmp.eq.s32.totalorder %s17, 0
      %p101 = por %p99, %p100
      %p102 = scmp.ne.s32.totalorder %s91, %s94
      %p103 = scmp.eq.s32.totalorder %s22, 1
      %p104 = por %p102, %p103
      %p105 = scmp.ne.s32.totalorder %s94, %s95
      %p106 = scmp.eq.s32.totalorder %s22, 0
      %p107 = por %p105, %p106
      %p108 = scmp.ne.s32.totalorder %s94, %s95
      %p109 = scmp.eq.s32.totalorder %s23, 1
      %p110 = por %p108, %p109
      %p112 = scmp.ne.s32.totalorder %s95, %s111
      %p113 = scmp.eq.s32.totalorder %s23, 0
      %p114 = por %p112, %p113
      %s115 = ssub.s32 %s24, %s36
      %p116 = scmp.eq.s32.totalorder %s115, 0
      %s118 = sadd.s32 %s117, 1
      %s119 = scalar_select %p116, %s117, %s118
      %p122 = pneg %p116
      %p123 = scmp.eq.s32.totalorder %s17, 1
      %p124 = por %p122, %p123
      %p125 = scmp.ne.s32.totalorder %s117, %s120
      %p126 = scmp.eq.s32.totalorder %s17, 0
      %p127 = por %p125, %p126
      %p128 = scmp.ne.s32.totalorder %s117, %s120
      %p129 = scmp.eq.s32.totalorder %s22, 1
      %p130 = por %p128, %p129
      %p131 = scmp.ne.s32.totalorder %s120, %s121
      %p132 = scmp.eq.s32.totalorder %s22, 0
      %p133 = por %p131, %p132
      %p134 = scmp.ne.s32.totalorder %s120, %s121
      %p135 = scmp.eq.s32.totalorder %s23, 1
      %p136 = por %p134, %p135
      %p138 = scmp.ne.s32.totalorder %s121, %s137
      %p139 = scmp.eq.s32.totalorder %s23, 0
      %p140 = por %p138, %p139
      %s141 = ssub.s32 %s25, %s32
      %s142 = ssub.s32 %s24, %s36
      %s143 = sor.u32 %s141, %s142
      %p144 = scmp.eq.s32.totalorder %s143, 0
      %s146 = sadd.s32 %s145, 1
      %s147 = scalar_select %p144, %s145, %s146
      %p150 = pneg %p144
      %p151 = scmp.eq.s32.totalorder %s17, 1
      %p152 = por %p150, %p151
      %p153 = scmp.ne.s32.totalorder %s145, %s148
      %p154 = scmp.eq.s32.totalorder %s17, 0
      %p155 = por %p153, %p154
      %p156 = scmp.ne.s32.totalorder %s145, %s148
      %p157 = scmp.eq.s32.totalorder %s22, 1
      %p158 = por %p156, %p157
      %p159 = scmp.ne.s32.totalorder %s148, %s149
      %p160 = scmp.eq.s32.totalorder %s22, 0
      %p161 = por %p159, %p160
      %p162 = scmp.ne.s32.totalorder %s148, %s149
      %p163 = scmp.eq.s32.totalorder %s23, 1
      %p164 = por %p162, %p163
      %p166 = scmp.ne.s32.totalorder %s149, %s165
      %p167 = scmp.eq.s32.totalorder %s23, 0
      %p168 = por %p166, %p167
      %p169 = scmp.le.s32.totalorder 1, %s17
      %p170 = scmp.lt.s32.totalorder %s17, 3
      %p171 = pnand %p169, %p170
      %p172 = pneg %p171
      // Predicated region
      $region9: #{tpu_custom_call.1} parent=5 // pred_check
        _
      $region10: #{tpu_custom_call.1} parent=5 // pred_check_branch
        %174 = sbr.rel (%p171) target = $region12
      $region11: #{tpu_custom_call.1} parent=5 // pred_region
        %s175 = ssub.s32 %s17, 1
        // Predicated region
        $region13: #{tpu_custom_call.1} parent=11 // pred_check
          %p176 = pneg %p55
        $region14: #{tpu_custom_call.1} parent=11 // pred_check_branch
          %178 = sbr.rel (%p176) target = $region16
        $region15: #{tpu_custom_call.1} parent=11 // pred_region
          %s180 = ssub.s32 16, 16
          %181 = vsyncadd [#allocation3], %s180
          %s182 = smul.addr %s27, 16
          %s183 = scalar_lea.hbm %s0, %s182
          %s185 = sshll.u32 [#allocation2], 4
          %s186 = int_to_ptr.vmem [resolvable:$true] %s185
          %188 = dma.hbm_to_vmem [thread:$0]  %s183, 16, %s186, [#allocation3]
        $region16: #{tpu_custom_call.1} parent=11 // pred_fallthru
          _
      $region12: #{tpu_custom_call.1} parent=5 // pred_fallthru
        _
      %p189 = scmp.lt.s32.totalorder %s17, 2
      // Predicated region
      $region17: #{tpu_custom_call.1} parent=5 // pred_check
        %p190 = pneg %p189
      $region18: #{tpu_custom_call.1} parent=5 // pred_check_branch
        %192 = sbr.rel (%p190) target = $region20
      $region19: #{tpu_custom_call.1} parent=5 // pred_region
        // Predicated region
        $region21: #{tpu_custom_call.1} parent=19 // pred_check
          %p193 = pneg %p75
        $region22: #{tpu_custom_call.1} parent=19 // pred_check_branch
          %195 = sbr.rel (%p193) target = $region24
        $region23: #{tpu_custom_call.1} parent=19 // pred_region
          %s196 = sand.u32 %s17, 1
          %s197 = scalar_lea.sflag [#allocation6], %s196
          %s198 = sand.u32 %s65, 1
          %s199 = smul.addr %s198, 32
          %s200 = scalar_lea.vmem [#allocation5], %s199
          %s201 = smul.u32 4, %s24
          %s203 = ssub.s32 512, 512
          %204 = vsyncadd %s197, %s203
          %s205 = smul.addr %s201, 128
          %s206 = scalar_lea.hbm %s1, %s205
          %s208 = sshll.u32 %s200, 4
          %s209 = int_to_ptr.vmem [resolvable:$true] %s208
          %211 = dma.hbm_to_vmem [thread:$0]  %s206, 512, %s209, %s197
        $region24: #{tpu_custom_call.1} parent=19 // pred_fallthru
          _
        // Predicated region
        $region25: #{tpu_custom_call.1} parent=19 // pred_check
          %p212 = pneg %p101
        $region26: #{tpu_custom_call.1} parent=19 // pred_check_branch
          %214 = sbr.rel (%p212) target = $region28
        $region27: #{tpu_custom_call.1} parent=19 // pred_region
          %s215 = sand.u32 %s17, 1
          %s216 = scalar_lea.sflag [#allocation6], %s215
          %s217 = sand.u32 %s91, 1
          %s218 = smul.addr %s217, 4
          %s219 = scalar_lea.vmem [#allocation7], %s218
          %s220 = smul.u32 4, %s24
          %s222 = ssub.s32 64, 64
          %223 = vsyncadd %s216, %s222
          %s224 = smul.addr %s220, 16
          %s225 = scalar_lea.hbm %s2, %s224
          %s227 = sshll.u32 %s219, 4
          %s228 = int_to_ptr.vmem [resolvable:$true] %s227
          %230 = dma.hbm_to_vmem [thread:$0]  %s225, 64, %s228, %s216
        $region28: #{tpu_custom_call.1} parent=19 // pred_fallthru
          _
        // Predicated region
        $region29: #{tpu_custom_call.1} parent=19 // pred_check
          %p231 = pneg %p127
        $region30: #{tpu_custom_call.1} parent=19 // pred_check_branch
          %233 = sbr.rel (%p231) target = $region32
        $region31: #{tpu_custom_call.1} parent=19 // pred_region
          %s234 = smul.u32 4, %s24
          %p235 = scmp.lt.s32.totalorder %s234, 7
          %s236 = scalar_select %p235, %s234, 7
          %s237 = scalar_lea.vmem %s3, %s236
          %s238 = smul.u32 4, %s24
        $region32: #{tpu_custom_call.1} parent=19 // pred_fallthru
          _
      $region20: #{tpu_custom_call.1} parent=5 // pred_fallthru
        _
      %p239 = scmp.le.s32.totalorder 1, %s17
      %p240 = scmp.lt.s32.totalorder %s17, 3
      %p241 = pnand %p239, %p240
      %p242 = pneg %p241
      // Predicated region
      $region33: #{tpu_custom_call.1} parent=5 // pred_check
        _
      $region34: #{tpu_custom_call.1} parent=5 // pred_check_branch
        %244 = sbr.rel (%p241) target = $region36
      $region35: #{tpu_custom_call.1} parent=5 // pred_region
        %s245 = ssub.s32 %s17, 1
        // Predicated region
        $region37: #{tpu_custom_call.1} parent=35 // pred_check
          %p246 = pneg %p55
        $region38: #{tpu_custom_call.1} parent=35 // pred_check_branch
          %248 = sbr.rel (%p246) target = $region40
        $region39: #{tpu_custom_call.1} parent=35 // pred_region
          %249 = dma.done [#allocation3], 16
        $region40: #{tpu_custom_call.1} parent=35 // pred_fallthru
          _
        %s250 = sand.u32 %s22, 1
        %s251 = scalar_lea.sflag [#allocation6], %s250
        %s252 = sand.u32 %s68, 1
        %s253 = smul.addr %s252, 32
        %s254 = scalar_lea.vmem [#allocation5], %s253
        // Predicated region
        $region41: #{tpu_custom_call.1} parent=35 // pred_check
          %p255 = pneg %p81
        $region42: #{tpu_custom_call.1} parent=35 // pred_check_branch
          %257 = sbr.rel (%p255) target = $region44
        $region43: #{tpu_custom_call.1} parent=35 // pred_region
          %258 = dma.done %s251, 512
        $region44: #{tpu_custom_call.1} parent=35 // pred_fallthru
          _
        %s259 = sand.u32 %s22, 1
        %s260 = scalar_lea.sflag [#allocation6], %s259
        %s261 = sand.u32 %s94, 1
        %s262 = smul.addr %s261, 4
        %s263 = scalar_lea.vmem [#allocation7], %s262
        // Predicated region
        $region45: #{tpu_custom_call.1} parent=35 // pred_check
          %p264 = pneg %p107
        $region46: #{tpu_custom_call.1} parent=35 // pred_check_branch
          %266 = sbr.rel (%p264) target = $region48
        $region47: #{tpu_custom_call.1} parent=35 // pred_region
          %267 = dma.done %s260, 64
        $region48: #{tpu_custom_call.1} parent=35 // pred_fallthru
          _
        %p268 = pneg %p55
        %p269 = pneg %p52
        %s270 = sand.u32 %s22, 1
        %s271 = scalar_lea.sflag [#allocation6], %s270
        %s272 = sand.u32 %s68, 1
        %s273 = smul.addr %s272, 32
        %s274 = scalar_lea.vmem [#allocation5], %s273
        %p275 = pneg %p81
        %p276 = pneg %p78
        %s277 = sand.u32 %s22, 1
        %s278 = scalar_lea.sflag [#allocation6], %s277
        %s279 = sand.u32 %s94, 1
        %s280 = smul.addr %s279, 4
        %s281 = scalar_lea.vmem [#allocation7], %s280
        %p282 = pneg %p107
        %p283 = pneg %p104
        %s284 = smul.u32 4, %s26
        %p285 = scmp.lt.s32.totalorder %s284, 7
        %s286 = scalar_select %p285, %s284, 7
        %s287 = scalar_lea.vmem %s3, %s286
        %p288 = pneg %p133
        %p289 = pneg %p130
        %p290 = pneg %p161
        %p291 = pneg %p158
        %s292 = sand.u32 %s148, 1
        %s293 = scalar_lea.sflag [#allocation4], %s292
        %s294 = sand.u32 %s148, 1
        %s295 = smul.addr %s294, 4
        %s296 = scalar_lea.vmem [#allocation8], %s295
        %s297 = smul.u32 4, %s26
        %s298 = smul.u32 4, %s26
        %s299 = smul.u32 4, %s26
        %p300 = scmp.lt.s32.totalorder %s299, 7
        %s301 = scalar_select %p300, %s299, 7
        %s302 = scalar_lea.vmem %s3, %s301
        %s303 = smul.u32 4, %s26
        %s304 = smul.u32 4, %s26
        %v306 = vld [vmem:[%s254] sm:$0xff]
        %v307 = vld [vmem:[%s254 + $0x8] sm:$0xff]
        %v308 = vld [vmem:[%s254 + $0x10] sm:$0xff]
        %v309 = vld [vmem:[%s254 + $0x18] sm:$0xff]
        %v310 = vunpack.c.0.s8 %v306
        %v311 = vunpack.c.0.s8 %v307
        %v312 = vunpack.c.0.s8 %v308
        %v313 = vunpack.c.0.s8 %v309
        %v314 = vunpack.c.1.s8 %v306
        %v315 = vunpack.c.1.s8 %v307
        %v316 = vunpack.c.1.s8 %v308
        %v317 = vunpack.c.1.s8 %v309
        %v318 = vunpack.c.2.s8 %v306
        %v319 = vunpack.c.2.s8 %v307
        %v320 = vunpack.c.2.s8 %v308
        %v321 = vunpack.c.2.s8 %v309
        %v322 = vunpack.c.3.s8 %v306
        %v323 = vunpack.c.3.s8 %v307
        %v324 = vunpack.c.3.s8 %v308
        %v325 = vunpack.c.3.s8 %v309
        %v326 = vcvt.s32.f32 %v310
        %v327 = vcvt.s32.f32 %v311
        %v328 = vcvt.s32.f32 %v312
        %v329 = vcvt.s32.f32 %v313
        %v330 = vcvt.s32.f32 %v314
        %v331 = vcvt.s32.f32 %v315
        %v332 = vcvt.s32.f32 %v316
        %v333 = vcvt.s32.f32 %v317
        %v334 = vcvt.s32.f32 %v318
        %v335 = vcvt.s32.f32 %v319
        %v336 = vcvt.s32.f32 %v320
        %v337 = vcvt.s32.f32 %v321
        %v338 = vcvt.s32.f32 %v322
        %v339 = vcvt.s32.f32 %v323
        %v340 = vcvt.s32.f32 %v324
        %v341 = vcvt.s32.f32 %v325
        %v342 = vld [vmem:[%s263] sm:$0xf]
        %v344 = vlaneseq
        %v345 = vshrl.u32 %v344, 7
        %v346 = vsub.s32 0, %v345
        %v347 = vrot.slane %v342, %v346
        %v348 = vlaneseq
        %v349 = vshrl.u32 %v348, 7
        %v350 = vsub.s32 1, %v349
        %v351 = vrot.slane %v342, %v350
        %v352 = vlaneseq
        %v353 = vshrl.u32 %v352, 7
        %v354 = vsub.s32 2, %v353
        %v355 = vrot.slane %v342, %v354
        %v356 = vlaneseq
        %v357 = vshrl.u32 %v356, 7
        %v358 = vsub.s32 3, %v357
        %v359 = vrot.slane %v342, %v358
        %v364 = vmul.f32 %v326, %v347
        %v365 = vmul.f32 %v327, %v351
        %v366 = vmul.f32 %v328, %v355
        %v367 = vmul.f32 %v329, %v359
        %v368 = vmul.f32 %v330, %v347
        %v369 = vmul.f32 %v331, %v351
        %v370 = vmul.f32 %v332, %v355
        %v371 = vmul.f32 %v333, %v359
        %v372 = vmul.f32 %v334, %v347
        %v373 = vmul.f32 %v335, %v351
        %v374 = vmul.f32 %v336, %v355
        %v375 = vmul.f32 %v337, %v359
        %v376 = vmul.f32 %v338, %v347
        %v377 = vmul.f32 %v339, %v351
        %v378 = vmul.f32 %v340, %v355
        %v379 = vmul.f32 %v341, %v359
        %v380 = vpack.c.bf16 %v368, %v364
        %v381 = vpack.c.bf16 %v369, %v365
        %v382 = vpack.c.bf16 %v370, %v366
        %v383 = vpack.c.bf16 %v371, %v367
        %v384 = vpack.c.bf16 %v376, %v372
        %v385 = vpack.c.bf16 %v377, %v373
        %v386 = vpack.c.bf16 %v378, %v374
        %v387 = vpack.c.bf16 %v379, %v375
        %v388 = vld [vmem:[#allocation2] sm:$0x1]
        %v389 = vld [vmem:[%s302] sm:$0xf]
        %v391 = vlaneseq
        %v392 = vshrl.u32 %v391, 7
        %v393 = vsub.s32 0, %v392
        %v394 = vrot.slane %v389, %v393
        %v395 = vlaneseq
        %v396 = vshrl.u32 %v395, 7
        %v397 = vsub.s32 1, %v396
        %v398 = vrot.slane %v389, %v397
        %v399 = vlaneseq
        %v400 = vshrl.u32 %v399, 7
        %v401 = vsub.s32 2, %v400
        %v402 = vrot.slane %v389, %v401
        %v403 = vlaneseq
        %v404 = vshrl.u32 %v403, 7
        %v405 = vsub.s32 3, %v404
        %v406 = vrot.slane %v389, %v405
        %vm411 = vcmask 261120
        %v413 = vsel %vm411, %v388, 0
        %415 = vmatprep.subr.bf16.mxu0 %v381
        %416 = vmatpush1.bf16.msra.mxu0 %v380
        %417 = vmatprep.subr.bf16.mxu0 %v385
        %418 = vmatpush1.bf16.msra.mxu0 %v384
        %419 = vmatprep.subr.bf16.mxu0 0
        %420 = vmatpush1.bf16.msra.mxu0 0
        %421 = vmatprep.subr.bf16.mxu0 0
        %422 = vmatpush1.bf16.msra.mxu0 0
        %423 = vmatprep.subr.bf16.mxu0 0
        %424 = vmatpush1.bf16.msra.mxu0 0
        %425 = vmatprep.subr.bf16.mxu0 0
        %426 = vmatpush1.bf16.msra.mxu0 0
        %427 = vmatprep.subr.bf16.mxu0 0
        %428 = vmatpush1.bf16.msra.mxu0 0
        %429 = vmatprep.subr.bf16.mxu0 0
        %430 = vmatpush1.bf16.msra.mxu0 0
        %431 = vmatprep.subr.bf16.mxu0 0
        %432 = vmatpush1.bf16.msra.mxu0 0
        %433 = vmatprep.subr.bf16.mxu0 0
        %434 = vmatpush1.bf16.msra.mxu0 0
        %435 = vmatprep.subr.bf16.mxu0 0
        %436 = vmatpush1.bf16.msra.mxu0 0
        %437 = vmatprep.subr.bf16.mxu0 0
        %438 = vmatpush1.bf16.msra.mxu0 0
        %439 = vmatprep.subr.bf16.mxu0 0
        %440 = vmatpush1.bf16.msra.mxu0 0
        %441 = vmatprep.subr.bf16.mxu0 0
        %442 = vmatpush1.bf16.msra.mxu0 0
        %443 = vmatprep.subr.bf16.mxu0 0
        %444 = vmatpush1.bf16.msra.mxu0 0
        %445 = vmatprep.subr.bf16.mxu0 0
        %446 = vmatpush1.bf16.msra.mxu0 0
        %447 = vmatprep.mubr.bf16.mxu0 0
        %448 = vmatmul.mubr.bf16.gmra.mrb[0].mxu0 %v413
        %v449 = vpop.f32.mrb[0].mxu0
        %v450 = vadd.f32 %v394, %v449
        %v451 = vpop.f32.mrb[0].mxu0
        %v452 = vadd.f32 %v398, %v451
        %v453 = vpop.f32.mrb[0].mxu0
        %v454 = vpop.f32.mrb[0].mxu0
        %455 = vdwg.mxu0
        %456 = vmatprep.subr.bf16.mxu0 %v383
        %457 = vmatpush1.bf16.msra.mxu0 %v382
        %458 = vmatprep.subr.bf16.mxu0 %v387
        %459 = vmatpush1.bf16.msra.mxu0 %v386
        %460 = vmatprep.subr.bf16.mxu0 0
        %461 = vmatpush1.bf16.msra.mxu0 0
        %462 = vmatprep.subr.bf16.mxu0 0
        %463 = vmatpush1.bf16.msra.mxu0 0
        %464 = vmatprep.subr.bf16.mxu0 0
        %465 = vmatpush1.bf16.msra.mxu0 0
        %466 = vmatprep.subr.bf16.mxu0 0
        %467 = vmatpush1.bf16.msra.mxu0 0
        %468 = vmatprep.subr.bf16.mxu0 0
        %469 = vmatpush1.bf16.msra.mxu0 0
        %470 = vmatprep.subr.bf16.mxu0 0
        %471 = vmatpush1.bf16.msra.mxu0 0
        %472 = vmatprep.subr.bf16.mxu0 0
        %473 = vmatpush1.bf16.msra.mxu0 0
        %474 = vmatprep.subr.bf16.mxu0 0
        %475 = vmatpush1.bf16.msra.mxu0 0
        %476 = vmatprep.subr.bf16.mxu0 0
        %477 = vmatpush1.bf16.msra.mxu0 0
        %478 = vmatprep.subr.bf16.mxu0 0
        %479 = vmatpush1.bf16.msra.mxu0 0
        %480 = vmatprep.subr.bf16.mxu0 0
        %481 = vmatpush1.bf16.msra.mxu0 0
        %482 = vmatprep.subr.bf16.mxu0 0
        %483 = vmatpush1.bf16.msra.mxu0 0
        %484 = vmatprep.subr.bf16.mxu0 0
        %485 = vmatpush1.bf16.msra.mxu0 0
        %486 = vmatprep.subr.bf16.mxu0 0
        %487 = vmatpush1.bf16.msra.mxu0 0
        %488 = vmatprep.mubr.bf16.mxu0 0
        %489 = vmatmul.mubr.bf16.gmra.mrb[0].mxu0 %v413
        %v490 = vpop.f32.mrb[0].mxu0
        %v491 = vadd.f32 %v402, %v490
        %v492 = vpop.f32.mrb[0].mxu0
        %v493 = vadd.f32 %v406, %v492
        %v494 = vpop.f32.mrb[0].mxu0
        %v495 = vpop.f32.mrb[0].mxu0
        %496 = vdwg.mxu0
        %v497 = vmax.f32 %v450, 0.0
        %v498 = vmax.f32 %v452, 0.0
        %v499 = vmax.f32 %v491, 0.0
        %v500 = vmax.f32 %v493, 0.0
        %v501 = vmin.f32 %v497, 1.0
        %v502 = vmin.f32 %v498, 1.0
        %v503 = vmin.f32 %v499, 1.0
        %v504 = vmin.f32 %v500, 1.0
        %v505 = vpack.c.bf16 %v501, %v501
        %v506 = vpack.c.bf16 %v502, %v502
        %v507 = vpack.c.bf16 %v503, %v503
        %v508 = vpack.c.bf16 %v504, %v504
        %v513 = vcombine.low %v505, %v506
        %v514 = vcombine.low %v507, %v508
        %v516 = vunpack.c.l.s4 1966171168
        %v517 = vunpack.c.0.s8 %v516
        %v518 = vlaneseq
        %v519 = vshrl.u32 %v518, 7
        %v520 = vsub.s32 %v517, %v519
        %v521 = vrot.slane %v513, %v520
        %v523 = vunpack.c.l.s4 1966171168
        %v524 = vunpack.c.0.s8 %v523
        %v525 = vlaneseq
        %v526 = vshrl.u32 %v525, 7
        %v527 = vsub.s32 %v524, %v526
        %v528 = vrot.slane %v514, %v527
        %v529 = vcombine.low %v521, %v528
        %v531 = vunpack.c.l.s4 1966171168
        %v532 = vunpack.c.0.s8 %v531
        %v533 = vlaneseq
        %v534 = vshrl.u32 %v533, 7
        %v535 = vsub.s32 %v532, %v534
        %v536 = vrot.slane %v529, %v535
        %538 = vst [vmem:[%s296] sm:$0xf] %v536
        %s539 = sand.u32 %s148, 1
        %s540 = scalar_lea.sflag [#allocation4], %s539
        %s541 = sand.u32 %s148, 1
        %s542 = smul.addr %s541, 4
        %s543 = scalar_lea.vmem [#allocation8], %s542
        // Predicated region
        $region49: #{tpu_custom_call.1} parent=35 // pred_check
          %p544 = pneg %p158
        $region50: #{tpu_custom_call.1} parent=35 // pred_check_branch
          %546 = sbr.rel (%p544) target = $region52
        $region51: #{tpu_custom_call.1} parent=35 // pred_region
          %s547 = smul.u32 4, %s26
          %s549 = ssub.s32 64, 64
          %550 = vsyncadd %s540, %s549
          %s551 = smul.addr %s27, 8
          %s552 = sadd.s32 %s547, %s551
          %s553 = smul.addr %s552, 16
          %s554 = scalar_lea.hbm %s4, %s553
          %s556 = sshll.u32 %s543, 4
          %s557 = int_to_ptr.vmem [resolvable:$true] %s556
          %559 = dma.vmem_to_hbm [thread:$0]  %s557, 64, %s554, %s540
        $region52: #{tpu_custom_call.1} parent=35 // pred_fallthru
          _
      $region36: #{tpu_custom_call.1} parent=5 // pred_fallthru
        _
      %p560 = scmp.le.s32.totalorder 2, %s17
      // Predicated region
      $region53: #{tpu_custom_call.1} parent=5 // pred_check
        %p561 = pneg %p560
      $region54: #{tpu_custom_call.1} parent=5 // pred_check_branch
        %563 = sbr.rel (%p561) target = $region56
      $region55: #{tpu_custom_call.1} parent=5 // pred_region
        %s564 = ssub.s32 %s17, 2
        // Predicated region
        $region57: #{tpu_custom_call.1} parent=55 // pred_check
          %p565 = pneg %p164
        $region58: #{tpu_custom_call.1} parent=55 // pred_check_branch
          %567 = sbr.rel (%p565) target = $region60
        $region59: #{tpu_custom_call.1} parent=55 // pred_region
          %s568 = sand.u32 %s149, 1
          %s569 = scalar_lea.sflag [#allocation4], %s568
          %s570 = sand.u32 %s149, 1
          %s571 = smul.addr %s570, 4
          %s572 = scalar_lea.vmem [#allocation8], %s571
          %573 = dma.done %s569, 64
        $region60: #{tpu_custom_call.1} parent=55 // pred_fallthru
          _
      $region56: #{tpu_custom_call.1} parent=5 // pred_fallthru
        _
    $region6: #{tpu_custom_call.1} parent=1 // loop_footer
      %s21 = sadd.s32 1, %s17
    $region7: #{tpu_custom_call.1} parent=1 // loop_footer_branch
      %16 = sbr.rel target = $region3
    $region8: #{tpu_custom_call.1} parent=1 // loop_exit
      _
    %574 = vsyncpa [#allocation3], 1
    %s575 = scalar_lea.sflag [#allocation3], 1
    %576 = vsyncpa %s575, 1
    %577 = vsyncpa [#allocation6], 1
    %s578 = scalar_lea.sflag [#allocation6], 1
    %579 = vsyncpa %s578, 1
    %580 = vsyncpa [#allocation4], 1
    %s581 = scalar_lea.sflag [#allocation4], 1
    %582 = vsyncpa %s581, 1

</llo_original>
